<compile_context>
chip_gen: v5e
topology: v5e:2x2
jax: 0.10.0
libtpu: 0.0.40
codegen_flags: <defaults>
</compile_context>

<pallas_src>
import functools

import jax
import jax.numpy as jnp
from jax.experimental import pallas as pl
from jax.experimental.pallas import tpu as pltpu


def _bbox_decoder_kernel(cls_ref, reg_ref, aux_ref, probs_ref, det_ref, *,
                         conf_thres, num_classes):
    # cls_ref  : (1, C, TA)  class logits (input dtype), anchors on lanes
    # reg_ref  : (1, 4, TA)  box offsets (input dtype)
    # aux_ref  : (8, TA)     per-anchor rows [w, h, w, h, cx, cy, 0, 0] (f32)
    # probs_ref: (1, C, TA)  softmax probs (input dtype)
    # det_ref  : (1, 8, TA)  fused [x, y, w, h, score, class, valid, 0] (f32)
    x = cls_ref[0].astype(jnp.float32)                        # (C, TA) f32 math

    # softmax over the class (sublane) axis; max prob == 1 / sum(exp(x - m))
    m = jnp.max(x, axis=0, keepdims=True)                     # (1, TA)
    e = jnp.exp(x - m)                                        # (C, TA)
    s = jnp.sum(e, axis=0, keepdims=True)                     # (1, TA)
    inv_s = pl.reciprocal(s)                                  # exact
    probs_ref[0] = (e * inv_s).astype(probs_ref.dtype)
    scores = inv_s                                            # (1, TA)

    # first-argmax over classes, computed on the logits (== argmax of softmax)
    cls_iota = jax.lax.broadcasted_iota(jnp.int32, x.shape, 0)          # (C, TA)
    cls_i = jnp.min(jnp.where(x == m, cls_iota, jnp.int32(num_classes)),
                    axis=0, keepdims=True)                    # (1, TA) class id
    cls_f = cls_i.astype(jnp.float32)

    # mask = (class > 0) & (score > conf_thres)
    valid = jnp.logical_and(cls_i > 0, scores > conf_thres)   # (1, TA)

    # decalc_offsets, whole-tile: boxes = off * [w,h,w,h] + [cx,cy,0,0]
    off = reg_ref[0].astype(jnp.float32)                      # (4, TA)
    boxes = off * aux_ref[0:4, :] + aux_ref[4:8, :]           # (4, TA)

    # fused per-anchor detection record, assembled once, stored once
    det = jnp.concatenate(
        [boxes, scores, cls_f, jnp.where(valid, 1.0, 0.0),
         jnp.zeros_like(scores)], axis=0)                     # (8, TA)
    det_ref[0] = det


def _choose_anchor_tile(A, B, anchor_tile, num_classes, vmem_budget_bytes):
    """Pick the anchor (lane) tile. Prefers a divisor of A (no pad, no slice)."""
    # f32 upper bound per anchor: cls + probs + reg + det + aux, double-buffered.
    per_anchor = 4 * (2 * num_classes + 4 + 8 + 8)
    vmem_cap = max(128, (vmem_budget_bytes // (2 * per_anchor)) // 128 * 128)
    cap = max(128, min(int(anchor_tile) // 128 * 128, vmem_cap))
    if A % 128 == 0:
        n = A // 128
        ta = 128
        for d in range(min(n, cap // 128), 0, -1):
            if n % d == 0:
                ta = d * 128
                break
        # v7x megacore: keep at least 2 grid steps when possible.
        if B * (A // ta) < 2 and ta % 256 == 0:
            ta //= 2
        return ta, 0
    if A <= vmem_cap:
        return A, 0            # full-extent lane block; no 128-alignment needed
    # Rare fallback for huge ragged A: pad the anchor axis up to the tile.
    ta = cap
    return ta, (-A) % ta


def _run_decoder_kernel(cls_t, reg_t, aux, conf_thres, ta):
    """cls_t: (B, C, A_pad), reg_t: (B, 4, A_pad), aux: (8, A_pad) f32."""
    B, C, A_pad = cls_t.shape
    num_a = A_pad // ta
    kernel = functools.partial(_bbox_decoder_kernel,
                               conf_thres=float(conf_thres), num_classes=C)
    out_shape = (
        jax.ShapeDtypeStruct((B, C, A_pad), cls_t.dtype),   # softmax probs
        jax.ShapeDtypeStruct((B, 8, A_pad), jnp.float32),   # fused detections
    )
    return pl.pallas_call(
        kernel,
        out_shape=out_shape,
        grid=(num_a, B),                                    # b innermost: anchor aux
        in_specs=[                                          # block stays resident.
            pl.BlockSpec((1, C, ta), lambda a, b: (b, 0, a)),
            pl.BlockSpec((1, 4, ta), lambda a, b: (b, 0, a)),
            pl.BlockSpec((8, ta), lambda a, b: (0, a)),
        ],
        out_specs=[
            pl.BlockSpec((1, C, ta), lambda a, b: (b, 0, a)),
            pl.BlockSpec((1, 8, ta), lambda a, b: (b, 0, a)),
        ],
        compiler_params=pltpu.CompilerParams(
            dimension_semantics=("parallel", "parallel"),
            vmem_limit_bytes=32 * 1024 * 1024),             # within v7x's 64 MiB
    )(cls_t, reg_t, aux)


def bbox_decoder_forward(encoded_cls, encoded_reg, anchor_boxes,
                         conf_thres=0.3, max_num=300, anchor_tile=8192,
                         vmem_budget_bytes=20 * 1024 * 1024):
    """Pallas-backed BboxDecoder.forward.

    encoded_cls: (B, A, C) logits, encoded_reg: (B, A, 4), anchor_boxes: (A, 4).
    Returns (softmax_cls (B,A,C), encoded_reg, boxes (B,K,4), scores (B,K),
             classes (B,K), valid (B,K) bool) where K = min(max_num, A).
    Rows with valid=False are padding (the original returns variable-length
    python lists per batch element).
    """
    B, A, C = encoded_cls.shape

    # Channel-major relayout so the anchor axis lands on the 128-wide lane
    # dimension inside the kernel (lane-dense loads/stores/compute).
    # TODO(synk): the zero-copy fix is for the SSD head to emit (B, C, A)
    # directly; here the relayout is one XLA mem-bound copy per tensor.
    cls_t = jnp.transpose(encoded_cls, (0, 2, 1))             # (B, C, A), own dtype
    reg_t = jnp.transpose(encoded_reg, (0, 2, 1))             # (B, 4, A), own dtype

    anch = anchor_boxes.astype(jnp.float32)                   # (A, 4) [cx,cy,w,h]
    w, h = anch[:, 2], anch[:, 3]
    cx, cy = anch[:, 0], anch[:, 1]
    zeros = jnp.zeros_like(w)
    aux = jnp.stack([w, h, w, h, cx, cy, zeros, zeros], axis=0)     # (8, A)

    ta, pad = _choose_anchor_tile(A, B, anchor_tile, C, vmem_budget_bytes)
    if pad:  # rare fallback; padded anchors: zero logits -> class 0 -> invalid
        cls_t = jnp.pad(cls_t, ((0, 0), (0, 0), (0, pad)))
        reg_t = jnp.pad(reg_t, ((0, 0), (0, 0), (0, pad)))
        aux = jnp.pad(aux, ((0, 0), (0, pad)))
    A_pad = A + pad

    probs_t, det = _run_decoder_kernel(cls_t, reg_t, aux, conf_thres, ta)

    # Back to the torch (B, A, C) layout for the returned softmax tensor.
    # TODO(synk): drop this transpose if the consumer can take channel-major probs.
    probs = jnp.transpose(probs_t[:, :, :A] if pad else probs_t, (0, 2, 1))

    # Fixed-size selection: valid anchors first (anchor order preserved), then
    # invalid.  K << A, so top_k of a packed key replaces the full A-length sort.
    # TODO(synk): the original emits variable-length python lists per image.
    K = min(int(max_num), A)
    idx = jnp.arange(A_pad, dtype=jnp.int32)[None, :]          # (1, A_pad)
    valid_all = det[:, 6, :] > 0.5                             # (B, A_pad)
    key = jnp.where(valid_all, idx, idx + A_pad)               # invalid -> pushed last
    neg_key_top, _ = jax.lax.top_k(-key, K)                    # (B, K)
    key_sel = -neg_key_top                                     # ascending packed key
    sel_valid = key_sel < A_pad
    sel_idx = jnp.where(sel_valid, key_sel, key_sel - A_pad)   # (B, K)
    gather_idx = jnp.broadcast_to(sel_idx[:, None, :], (B, 8, K))
    sel_det = jnp.take_along_axis(det, gather_idx, axis=2)     # (B, 8, K)

    sel_boxes = jnp.transpose(sel_det[:, 0:4, :], (0, 2, 1))   # (B, K, 4)
    sel_scores = sel_det[:, 4, :]
    sel_classes = sel_det[:, 5, :].astype(jnp.int32)

    return (probs, encoded_reg, sel_boxes, sel_scores, sel_classes, sel_valid)


def _reference_forward(encoded_cls, encoded_reg, anchor_boxes, conf_thres):
    """Plain-JAX dense reference (softmax/max/mask/box-decode) for checking."""
    probs = jax.nn.softmax(encoded_cls.astype(jnp.float32), axis=2)
    scores = jnp.max(probs, axis=2)
    classes = jnp.argmax(encoded_cls, axis=2).astype(jnp.int32)
    mask = (classes > 0) & (scores > conf_thres)
    anch = anchor_boxes.astype(jnp.float32)[None]                       # (1,A,4)
    off = encoded_reg.astype(jnp.float32)
    xy = off[..., :2] * anch[..., 2:4] + anch[..., :2]
    wh = off[..., 2:4] * anch[..., 2:4]
    boxes = jnp.concatenate([xy, wh], axis=-1)
    return probs, scores, classes, mask, boxes


if __name__ == "__main__":
    # Small synthetic shapes: batch=2, anchors=256, classes=8 (class 0 = background).
    B, A, C = 2, 256, 8
    conf_thres = 0.3
    max_num = 300

    key = jax.random.PRNGKey(0)
    k_cls, k_reg, k_anc = jax.random.split(key, 3)
    encoded_cls = jax.random.normal(k_cls, (B, A, C), dtype=jnp.float32)
    encoded_reg = 0.1 * jax.random.normal(k_reg, (B, A, 4), dtype=jnp.float32)
    centers = jax.random.uniform(k_anc, (A, 2), minval=0.0, maxval=300.0)
    sizes = jnp.full((A, 2), 32.0) + 8.0 * jnp.arange(A, dtype=jnp.float32)[:, None] / A
    anchor_boxes = jnp.concatenate([centers, sizes], axis=1)            # (A, 4)

    # anchor_tile=128 forces a 2-tile anchor grid even at this small A, so the
    # tiled/pipelined path is actually exercised (grid = (2, 2)).
    fwd = jax.jit(functools.partial(bbox_decoder_forward,
                                    conf_thres=conf_thres, max_num=max_num,
                                    anchor_tile=128))
    probs, reg_out, boxes, scores, classes, valid = fwd(
        encoded_cls, encoded_reg, anchor_boxes)
    jax.block_until_ready((probs, reg_out, boxes, scores, classes, valid))

    # Correctness check against a plain-JAX dense reference, using the same
    # fixed-size selection rule (valid anchors first, anchor order preserved).
    r_probs, r_scores, r_classes, r_mask, r_boxes = _reference_forward(
        encoded_cls, encoded_reg, anchor_boxes, conf_thres)
    assert jnp.allclose(probs, r_probs, atol=1e-5, rtol=1e-5)
    assert jnp.array_equal(reg_out, encoded_reg)

    K = min(max_num, A)
    idx = jnp.arange(A, dtype=jnp.int32)[None, :]
    key_ref = jnp.where(r_mask, idx, idx + A)
    key_sorted = jnp.sort(key_ref, axis=1)[:, :K]
    exp_valid = key_sorted < A
    exp_idx = jnp.where(exp_valid, key_sorted, key_sorted - A)
    assert jnp.array_equal(valid, exp_valid)

    exp_boxes = jnp.take_along_axis(r_boxes, exp_idx[..., None], axis=1)
    exp_scores = jnp.take_along_axis(r_scores, exp_idx, axis=1)
    exp_classes = jnp.take_along_axis(r_classes, exp_idx, axis=1)
    assert jnp.allclose(jnp.where(valid[..., None], boxes, 0.0),
                        jnp.where(valid[..., None], exp_boxes, 0.0),
                        atol=1e-4, rtol=1e-4)
    assert jnp.allclose(jnp.where(valid, scores, 0.0),
                        jnp.where(valid, exp_scores, 0.0),
                        atol=1e-5, rtol=1e-5)
    assert jnp.array_equal(jnp.where(valid, classes, -1),
                           jnp.where(valid, exp_classes, -1))

    print("KERNEL_OK")
</pallas_src>

<mosaic_0001>
module attributes {stable_mosaic.version = 11 : i64} {
  func.func @_bbox_decoder_kernel(%arg0: i32, %arg1: i32, %arg2: memref<1x8x128xf32, #tpu.memory_space<vmem>>, %arg3: memref<1x4x128xf32, #tpu.memory_space<vmem>>, %arg4: memref<8x128xf32, #tpu.memory_space<vmem>>, %arg5: memref<1x8x128xf32, #tpu.memory_space<vmem>>, %arg6: memref<1x8x128xf32, #tpu.memory_space<vmem>>) attributes {dimension_semantics = [#tpu.dimension_semantics<parallel>, #tpu.dimension_semantics<parallel>], iteration_bounds = array<i64: 2, 2>, scalar_prefetch = 0 : i64, scratch_operands = 0 : i64, tpu.core_type = #tpu.core_type<tc>, window_params = [{transform_indices = @transform_0, window_bounds = array<i64: 1, 8, 128>}, {transform_indices = @transform_1, window_bounds = array<i64: 1, 4, 128>}, {transform_indices = @transform_2, window_bounds = array<i64: 8, 128>}, {transform_indices = @transform_3, window_bounds = array<i64: 1, 8, 128>}, {transform_indices = @transform_4, window_bounds = array<i64: 1, 8, 128>}]} {
    %c0 = arith.constant 0 : index
    %c0_0 = arith.constant 0 : index
    %c0_1 = arith.constant 0 : index
    %0 = vector.load %arg2[%c0, %c0_0, %c0_1] : memref<1x8x128xf32, #tpu.memory_space<vmem>>, vector<1x8x128xf32>
    %1 = vector.shape_cast %0 : vector<1x8x128xf32> to vector<8x128xf32>
    %cst = arith.constant dense<0xFF800000> : vector<128xf32>
    %2 = vector.multi_reduction <maximumf>, %1, %cst [0] : vector<8x128xf32> to vector<128xf32>
    %3 = vector.shape_cast %2 : vector<128xf32> to vector<1x128xf32>
    %4 = vector.broadcast %3 : vector<1x128xf32> to vector<8x128xf32>
    %5 = arith.subf %1, %4 : vector<8x128xf32>
    %6 = math.exp %5 : vector<8x128xf32>
    %cst_2 = arith.constant dense<0.000000e+00> : vector<128xf32>
    %7 = vector.multi_reduction <add>, %6, %cst_2 [0] : vector<8x128xf32> to vector<128xf32>
    %8 = vector.shape_cast %7 : vector<128xf32> to vector<1x128xf32>
    %9 = tpu.reciprocal %8 : vector<1x128xf32> -> vector<1x128xf32>
    %10 = vector.broadcast %9 : vector<1x128xf32> to vector<8x128xf32>
    %11 = arith.mulf %6, %10 : vector<8x128xf32>
    %c0_3 = arith.constant 0 : index
    %c0_4 = arith.constant 0 : index
    %c0_5 = arith.constant 0 : index
    %12 = vector.load %arg5[%c0_3, %c0_4, %c0_5] : memref<1x8x128xf32, #tpu.memory_space<vmem>>, vector<1x8x128xf32>
    %13 = vector.shape_cast %12 : vector<1x8x128xf32> to vector<8x128xf32>
    %14 = vector.shape_cast %11 : vector<8x128xf32> to vector<1x8x128xf32>
    tpu.vector_store %arg5[%c0_3, %c0_4, %c0_5], %14 {strides = array<i32>} : memref<1x8x128xf32, #tpu.memory_space<vmem>>, vector<1x8x128xf32>,
    %15 = tpu.iota {dimensions = array<i32: 0>} : vector<8x128xi32>
    %16 = vector.broadcast %3 : vector<1x128xf32> to vector<8x128xf32>
    %17 = arith.cmpf oeq, %1, %16 : vector<8x128xf32>
    %c8_i32 = arith.constant 8 : i32
    %18 = vector.broadcast %c8_i32 : i32 to vector<8x128xi32>
    %19 = arith.select %17, %15, %18 : vector<8x128xi1>, vector<8x128xi32>
    %cst_6 = arith.constant dense<2147483647> : vector<128xi32>
    %20 = vector.multi_reduction <minsi>, %19, %cst_6 [0] : vector<8x128xi32> to vector<128xi32>
    %21 = vector.shape_cast %20 : vector<128xi32> to vector<1x128xi32>
    %22 = arith.sitofp %21 : vector<1x128xi32> to vector<1x128xf32>
    %c0_i32 = arith.constant 0 : i32
    %23 = vector.broadcast %c0_i32 : i32 to vector<1x128xi32>
    %24 = arith.cmpi sgt, %21, %23 : vector<1x128xi32>
    %cst_7 = arith.constant 3.000000e-01 : f32
    %25 = vector.broadcast %cst_7 : f32 to vector<1x128xf32>
    %26 = arith.cmpf ogt, %9, %25 : vector<1x128xf32>
    %27 = arith.andi %24, %26 : vector<1x128xi1>
    %c0_8 = arith.constant 0 : index
    %c0_9 = arith.constant 0 : index
    %c0_10 = arith.constant 0 : index
    %28 = vector.load %arg3[%c0_8, %c0_9, %c0_10] : memref<1x4x128xf32, #tpu.memory_space<vmem>>, vector<1x4x128xf32>
    %29 = vector.shape_cast %28 : vector<1x4x128xf32> to vector<4x128xf32>
    %c0_11 = arith.constant 0 : index
    %c0_12 = arith.constant 0 : index
    %30 = vector.load %arg4[%c0_11, %c0_12] : memref<8x128xf32, #tpu.memory_space<vmem>>, vector<4x128xf32>
    %31 = arith.mulf %29, %30 : vector<4x128xf32>
    %c4 = arith.constant 4 : index
    %c0_13 = arith.constant 0 : index
    %32 = vector.load %arg4[%c4, %c0_13] : memref<8x128xf32, #tpu.memory_space<vmem>>, vector<4x128xf32>
    %33 = arith.addf %31, %32 : vector<4x128xf32>
    %cst_14 = arith.constant 1.000000e+00 : f32
    %cst_15 = arith.constant 0.000000e+00 : f32
    %34 = vector.broadcast %cst_14 : f32 to vector<1x128xf32>
    %35 = vector.broadcast %cst_15 : f32 to vector<1x128xf32>
    %36 = arith.select %27, %34, %35 : vector<1x128xi1>, vector<1x128xf32>
    %cst_16 = arith.constant 0.000000e+00 : f32
    %37 = vector.broadcast %cst_16 : f32 to vector<1x128xf32>
    %38 = tpu.concatenate %33, %9, %22, %36, %37 in 0 : vector<4x128xf32>, vector<1x128xf32>, vector<1x128xf32>, vector<1x128xf32>, vector<1x128xf32> -> vector<8x128xf32>
    %c0_17 = arith.constant 0 : index
    %c0_18 = arith.constant 0 : index
    %c0_19 = arith.constant 0 : index
    %39 = vector.load %arg6[%c0_17, %c0_18, %c0_19] : memref<1x8x128xf32, #tpu.memory_space<vmem>>, vector<1x8x128xf32>
    %40 = vector.shape_cast %39 : vector<1x8x128xf32> to vector<8x128xf32>
    %41 = vector.shape_cast %38 : vector<8x128xf32> to vector<1x8x128xf32>
    tpu.vector_store %arg6[%c0_17, %c0_18, %c0_19], %41 {strides = array<i32>} : memref<1x8x128xf32, #tpu.memory_space<vmem>>, vector<1x8x128xf32>,
    return
  }
  func.func @transform_0(%arg0: i32, %arg1: i32) -> (i32, i32, i32) {
    %c0_i32 = arith.constant 0 : i32
    %c0_i32_0 = arith.constant 0 : i32
    return %arg1, %c0_i32, %arg0 : i32, i32, i32
  }
  func.func @transform_1(%arg0: i32, %arg1: i32) -> (i32, i32, i32) {
    %c0_i32 = arith.constant 0 : i32
    %c0_i32_0 = arith.constant 0 : i32
    return %arg1, %c0_i32, %arg0 : i32, i32, i32
  }
  func.func @transform_2(%arg0: i32, %arg1: i32) -> (i32, i32) {
    %c0_i32 = arith.constant 0 : i32
    %c0_i32_0 = arith.constant 0 : i32
    return %c0_i32, %arg0 : i32, i32
  }
  func.func @transform_3(%arg0: i32, %arg1: i32) -> (i32, i32, i32) {
    %c0_i32 = arith.constant 0 : i32
    %c0_i32_0 = arith.constant 0 : i32
    return %arg1, %c0_i32, %arg0 : i32, i32, i32
  }
  func.func @transform_4(%arg0: i32, %arg1: i32) -> (i32, i32, i32) {
    %c0_i32 = arith.constant 0 : i32
    %c0_i32_0 = arith.constant 0 : i32
    return %arg1, %c0_i32, %arg0 : i32, i32, i32
  }
}

</mosaic_0001>

<llo_original>
// kernel: bbox_decoder_forward.1
$region0: #{bbox_decoder_forward.1}
  #allocation0 [shape = 'u32[]', space=smem, size = 0x4, offset = 0x4, fixed_abs, tag = 'smem constant byte address 0x4 - core index']
  #allocation1 [shape = 'u32[72,128]{1,0:T(1,128)}', space=vmem, size = 0x9000, scoped, tag = 'internal scratch']
  %s0 = inlined_call_operand.vmem [shape: f32[2,8,256], index: 0, kind: input, shape index: {}]
  %s1 = inlined_call_operand.vmem [shape: f32[2,4,256], index: 1, kind: input, shape index: {}]
  %s2 = inlined_call_operand.vmem [shape: f32[8,256], index: 2, kind: input, shape index: {}]
  %s3 = inlined_call_operand.hbm [shape: f32[2,8,256], index: 3, kind: output, shape index: {0}]
  %s4 = inlined_call_operand.vmem [shape: f32[2,8,256], index: 4, kind: output, shape index: {1}]
  %5 = xla_tuple %s3, %s4
  %s6 = sld [smem:[#allocation0]]
  $region53: #{bbox_decoder_forward.1} parent=0
    _
  %s8 = ssub.s32 1, %s6
  %s9 = scalar_select 0, %s8, %s6
  $region1: #{bbox_decoder_forward.1} parent=0
    #allocation2 [shape = 'u8[8192]{0}', space=vmem, size = 0x2000, scoped, tag = 'output window, operand 0']
    #allocation3 [shape = 's32[2]{0}', space=sflag, size = 0x8, scoped, tag = 'scoped memory for bbox_decoder_forward.1']
    %10 = vsyncpa [#allocation3], 0
    %s11 = scalar_lea.sflag [#allocation3], 1
    %12 = vsyncpa %s11, 0
    loop: start=0, step=1, limit=6
    $region2: #{bbox_decoder_forward.1} parent=1 // loop_pre_header
      _
    $region3: #{bbox_decoder_forward.1} parent=1 // loop_header
      %s14 = sphi 0, %s18
      %p15 = scmp.ge.s32.totalorder %s14, 6
      %s21 = sphi 0, %s33
      %s22 = sphi 0, %s29
      %s23 = sphi 0, %s21
      %s24 = sphi 0, %s22
      %s25 = sphi 0, %s23
      %s26 = sphi 0, %s24
      %s38 = sphi 0, %s40
      %s41 = sphi 0, %s38
      %s42 = sphi 0, %s41
      %s58 = sphi 0, %s42
      %s66 = sphi 0, %s68
      %s69 = sphi 0, %s66
      %s70 = sphi 0, %s69
      %s86 = sphi 0, %s70
      %s92 = sphi 0, %s94
      %s95 = sphi 0, %s92
      %s96 = sphi 0, %s95
      %s112 = sphi 0, %s96
      %s120 = sphi 0, %s122
      %s123 = sphi 0, %s120
      %s124 = sphi 0, %s123
      %s140 = sphi 0, %s124
      %s148 = sphi 0, %s150
      %s151 = sphi 0, %s148
      %s152 = sphi 0, %s151
      %s168 = sphi 0, %s152
    $region4: #{bbox_decoder_forward.1} parent=1 // loop_header_branch
      %17 = sbr.rel (%p15) target = $region8
    $region5: #{bbox_decoder_forward.1} parent=1 // loop_body
      %s19 = ssub.s32 %s14, 1
      %s20 = ssub.s32 %s14, 2
      %s27 = sadd.s32 1, %s22
      %p28 = scmp.ge.s32.totalorder %s27, 2
      %s29 = scalar_select %p28, 0, %s27
      %s30 = sadd.s32 1, %s21
      %s31 = scalar_select %p28, %s30, %s21
      %p32 = scmp.ge.s32.totalorder %s31, 2
      %s33 = scalar_select %p32, 0, %s31
      %s34 = ssub.s32 %s22, %s29
      %s35 = ssub.s32 %s21, %s33
      %s36 = sor.u32 %s34, %s35
      %p37 = scmp.eq.s32.totalorder %s36, 0
      %s39 = sadd.s32 %s38, 1
      %s40 = scalar_select %p37, %s38, %s39
      %p43 = pneg %p37
      %p44 = scmp.eq.s32.totalorder %s14, 3
      %p45 = por %p43, %p44
      %p46 = scmp.ne.s32.totalorder %s38, %s41
      %p47 = scmp.eq.s32.totalorder %s14, 0
      %p48 = por %p46, %p47
      %p49 = scmp.ne.s32.totalorder %s38, %s41
      %p50 = scmp.eq.s32.totalorder %s19, 3
      %p51 = por %p49, %p50
      %p52 = scmp.ne.s32.totalorder %s41, %s42
      %p53 = scmp.eq.s32.totalorder %s19, 0
      %p54 = por %p52, %p53
      %p55 = scmp.ne.s32.totalorder %s41, %s42
      %p56 = scmp.eq.s32.totalorder %s20, 3
      %p57 = por %p55, %p56
      %p59 = scmp.ne.s32.totalorder %s42, %s58
      %p60 = scmp.eq.s32.totalorder %s20, 0
      %p61 = por %p59, %p60
      %s62 = ssub.s32 %s22, %s29
      %s63 = ssub.s32 %s21, %s33
      %s64 = sor.u32 %s62, %s63
      %p65 = scmp.eq.s32.totalorder %s64, 0
      %s67 = sadd.s32 %s66, 1
      %s68 = scalar_select %p65, %s66, %s67
      %p71 = pneg %p65
      %p72 = scmp.eq.s32.totalorder %s14, 3
      %p73 = por %p71, %p72
      %p74 = scmp.ne.s32.totalorder %s66, %s69
      %p75 = scmp.eq.s32.totalorder %s14, 0
      %p76 = por %p74, %p75
      %p77 = scmp.ne.s32.totalorder %s66, %s69
      %p78 = scmp.eq.s32.totalorder %s19, 3
      %p79 = por %p77, %p78
      %p80 = scmp.ne.s32.totalorder %s69, %s70
      %p81 = scmp.eq.s32.totalorder %s19, 0
      %p82 = por %p80, %p81
      %p83 = scmp.ne.s32.totalorder %s69, %s70
      %p84 = scmp.eq.s32.totalorder %s20, 3
      %p85 = por %p83, %p84
      %p87 = scmp.ne.s32.totalorder %s70, %s86
      %p88 = scmp.eq.s32.totalorder %s20, 0
      %p89 = por %p87, %p88
      %s90 = ssub.s32 %s21, %s33
      %p91 = scmp.eq.s32.totalorder %s90, 0
      %s93 = sadd.s32 %s92, 1
      %s94 = scalar_select %p91, %s92, %s93
      %p97 = pneg %p91
      %p98 = scmp.eq.s32.totalorder %s14, 3
      %p99 = por %p97, %p98
      %p100 = scmp.ne.s32.totalorder %s92, %s95
      %p101 = scmp.eq.s32.totalorder %s14, 0
      %p102 = por %p100, %p101
      %p103 = scmp.ne.s32.totalorder %s92, %s95
      %p104 = scmp.eq.s32.totalorder %s19, 3
      %p105 = por %p103, %p104
      %p106 = scmp.ne.s32.totalorder %s95, %s96
      %p107 = scmp.eq.s32.totalorder %s19, 0
      %p108 = por %p106, %p107
      %p109 = scmp.ne.s32.totalorder %s95, %s96
      %p110 = scmp.eq.s32.totalorder %s20, 3
      %p111 = por %p109, %p110
      %p113 = scmp.ne.s32.totalorder %s96, %s112
      %p114 = scmp.eq.s32.totalorder %s20, 0
      %p115 = por %p113, %p114
      %s116 = ssub.s32 %s22, %s29
      %s117 = ssub.s32 %s21, %s33
      %s118 = sor.u32 %s116, %s117
      %p119 = scmp.eq.s32.totalorder %s118, 0
      %s121 = sadd.s32 %s120, 1
      %s122 = scalar_select %p119, %s120, %s121
      %p125 = pneg %p119
      %p126 = scmp.eq.s32.totalorder %s14, 3
      %p127 = por %p125, %p126
      %p128 = scmp.ne.s32.totalorder %s120, %s123
      %p129 = scmp.eq.s32.totalorder %s14, 0
      %p130 = por %p128, %p129
      %p131 = scmp.ne.s32.totalorder %s120, %s123
      %p132 = scmp.eq.s32.totalorder %s19, 3
      %p133 = por %p131, %p132
      %p134 = scmp.ne.s32.totalorder %s123, %s124
      %p135 = scmp.eq.s32.totalorder %s19, 0
      %p136 = por %p134, %p135
      %p137 = scmp.ne.s32.totalorder %s123, %s124
      %p138 = scmp.eq.s32.totalorder %s20, 3
      %p139 = por %p137, %p138
      %p141 = scmp.ne.s32.totalorder %s124, %s140
      %p142 = scmp.eq.s32.totalorder %s20, 0
      %p143 = por %p141, %p142
      %s144 = ssub.s32 %s22, %s29
      %s145 = ssub.s32 %s21, %s33
      %s146 = sor.u32 %s144, %s145
      %p147 = scmp.eq.s32.totalorder %s146, 0
      %s149 = sadd.s32 %s148, 1
      %s150 = scalar_select %p147, %s148, %s149
      %p153 = pneg %p147
      %p154 = scmp.eq.s32.totalorder %s14, 3
      %p155 = por %p153, %p154
      %p156 = scmp.ne.s32.totalorder %s148, %s151
      %p157 = scmp.eq.s32.totalorder %s14, 0
      %p158 = por %p156, %p157
      %p159 = scmp.ne.s32.totalorder %s148, %s151
      %p160 = scmp.eq.s32.totalorder %s19, 3
      %p161 = por %p159, %p160
      %p162 = scmp.ne.s32.totalorder %s151, %s152
      %p163 = scmp.eq.s32.totalorder %s19, 0
      %p164 = por %p162, %p163
      %p165 = scmp.ne.s32.totalorder %s151, %s152
      %p166 = scmp.eq.s32.totalorder %s20, 3
      %p167 = por %p165, %p166
      %p169 = scmp.ne.s32.totalorder %s152, %s168
      %p170 = scmp.eq.s32.totalorder %s20, 0
      %p171 = por %p169, %p170
      %p172 = scmp.le.s32.totalorder 1, %s14
      %p173 = scmp.lt.s32.totalorder %s14, 5
      %p174 = pnand %p172, %p173
      %p175 = pneg %p174
      // Predicated region
      $region9: #{bbox_decoder_forward.1} parent=5 // pred_check
        _
      $region10: #{bbox_decoder_forward.1} parent=5 // pred_check_branch
        %177 = sbr.rel (%p174) target = $region12
      $region11: #{bbox_decoder_forward.1} parent=5 // pred_region
        %s178 = ssub.s32 %s14, 1
      $region12: #{bbox_decoder_forward.1} parent=5 // pred_fallthru
        _
      %p179 = scmp.lt.s32.totalorder %s14, 4
      // Predicated region
      $region13: #{bbox_decoder_forward.1} parent=5 // pred_check
        %p180 = pneg %p179
      $region14: #{bbox_decoder_forward.1} parent=5 // pred_check_branch
        %182 = sbr.rel (%p180) target = $region16
      $region15: #{bbox_decoder_forward.1} parent=5 // pred_region
        // Predicated region
        $region17: #{bbox_decoder_forward.1} parent=15 // pred_check
          %p183 = pneg %p48
        $region18: #{bbox_decoder_forward.1} parent=15 // pred_check_branch
          %185 = sbr.rel (%p183) target = $region20
        $region19: #{bbox_decoder_forward.1} parent=15 // pred_region
          %p186 = scmp.lt.s32.totalorder %s22, 1
          %s187 = scalar_select %p186, %s22, 1
          %p188 = scmp.lt.s32.totalorder %s21, 1
          %s189 = scalar_select %p188, %s21, 1
          %s190 = smul.addr %s187, 2
          %s191 = sadd.s32 %s189, %s190
          %s192 = smul.addr %s191, 8
          %s193 = scalar_lea.vmem %s0, %s192
        $region20: #{bbox_decoder_forward.1} parent=15 // pred_fallthru
          _
        // Predicated region
        $region21: #{bbox_decoder_forward.1} parent=15 // pred_check
          %p194 = pneg %p76
        $region22: #{bbox_decoder_forward.1} parent=15 // pred_check_branch
          %196 = sbr.rel (%p194) target = $region24
        $region23: #{bbox_decoder_forward.1} parent=15 // pred_region
          %p197 = scmp.lt.s32.totalorder %s22, 1
          %s198 = scalar_select %p197, %s22, 1
          %p199 = scmp.lt.s32.totalorder %s21, 1
          %s200 = scalar_select %p199, %s21, 1
          %s201 = smul.addr %s198, 2
          %s202 = sadd.s32 %s200, %s201
          %s203 = smul.addr %s202, 4
          %s204 = scalar_lea.vmem %s1, %s203
        $region24: #{bbox_decoder_forward.1} parent=15 // pred_fallthru
          _
        // Predicated region
        $region25: #{bbox_decoder_forward.1} parent=15 // pred_check
          %p205 = pneg %p102
        $region26: #{bbox_decoder_forward.1} parent=15 // pred_check_branch
          %207 = sbr.rel (%p205) target = $region28
        $region27: #{bbox_decoder_forward.1} parent=15 // pred_region
          %p208 = scmp.lt.s32.totalorder %s21, 1
          %s209 = scalar_select %p208, %s21, 1
          %s210 = smul.addr %s209, 8
          %s211 = scalar_lea.vmem %s2, %s210
        $region28: #{bbox_decoder_forward.1} parent=15 // pred_fallthru
          _
      $region16: #{bbox_decoder_forward.1} parent=5 // pred_fallthru
        _
      %p212 = scmp.le.s32.totalorder 1, %s14
      %p213 = scmp.lt.s32.totalorder %s14, 5
      %p214 = pnand %p212, %p213
      %p215 = pneg %p214
      // Predicated region
      $region29: #{bbox_decoder_forward.1} parent=5 // pred_check
        _
      $region30: #{bbox_decoder_forward.1} parent=5 // pred_check_branch
        %217 = sbr.rel (%p214) target = $region32
      $region31: #{bbox_decoder_forward.1} parent=5 // pred_region
        %s218 = ssub.s32 %s14, 1
        %p219 = scmp.lt.s32.totalorder %s24, 1
        %s220 = scalar_select %p219, %s24, 1
        %p221 = scmp.lt.s32.totalorder %s23, 1
        %s222 = scalar_select %p221, %s23, 1
        %s223 = smul.addr %s220, 2
        %s224 = sadd.s32 %s222, %s223
        %s225 = smul.addr %s224, 8
        %s226 = scalar_lea.vmem %s0, %s225
        %p227 = pneg %p54
        %p228 = pneg %p51
        %p229 = scmp.lt.s32.totalorder %s24, 1
        %s230 = scalar_select %p229, %s24, 1
        %p231 = scmp.lt.s32.totalorder %s23, 1
        %s232 = scalar_select %p231, %s23, 1
        %s233 = smul.addr %s230, 2
        %s234 = sadd.s32 %s232, %s233
        %s235 = smul.addr %s234, 4
        %s236 = scalar_lea.vmem %s1, %s235
        %p237 = pneg %p82
        %p238 = pneg %p79
        %p239 = scmp.lt.s32.totalorder %s23, 1
        %s240 = scalar_select %p239, %s23, 1
        %s241 = smul.addr %s240, 8
        %s242 = scalar_lea.vmem %s2, %s241
        %p243 = pneg %p108
        %p244 = pneg %p105
        %p245 = pneg %p136
        %p246 = pneg %p133
        %s247 = sand.u32 %s123, 1
        %s248 = scalar_lea.sflag [#allocation3], %s247
        %s249 = sand.u32 %s123, 1
        %s250 = smul.addr %s249, 8
        %s251 = scalar_lea.vmem [#allocation2], %s250
        %p252 = pneg %p164
        %p253 = pneg %p161
        %p254 = scmp.lt.s32.totalorder %s24, 1
        %s255 = scalar_select %p254, %s24, 1
        %p256 = scmp.lt.s32.totalorder %s23, 1
        %s257 = scalar_select %p256, %s23, 1
        %s258 = smul.addr %s255, 2
        %s259 = sadd.s32 %s257, %s258
        %s260 = smul.addr %s259, 8
        %s261 = scalar_lea.vmem %s4, %s260
        %p262 = scmp.lt.s32.totalorder %s24, 1
        %s263 = scalar_select %p262, %s24, 1
        %p264 = scmp.lt.s32.totalorder %s23, 1
        %s265 = scalar_select %p264, %s23, 1
        %s266 = smul.addr %s263, 2
        %s267 = sadd.s32 %s265, %s266
        %s268 = smul.addr %s267, 8
        %s269 = scalar_lea.vmem %s0, %s268
        %p270 = scmp.lt.s32.totalorder %s24, 1
        %s271 = scalar_select %p270, %s24, 1
        %p272 = scmp.lt.s32.totalorder %s23, 1
        %s273 = scalar_select %p272, %s23, 1
        %s274 = smul.addr %s271, 2
        %s275 = sadd.s32 %s273, %s274
        %s276 = smul.addr %s275, 4
        %s277 = scalar_lea.vmem %s1, %s276
        %p278 = scmp.lt.s32.totalorder %s23, 1
        %s279 = scalar_select %p278, %s23, 1
        %s280 = smul.addr %s279, 8
        %s281 = scalar_lea.vmem %s2, %s280
        %p282 = scmp.lt.s32.totalorder %s24, 1
        %s283 = scalar_select %p282, %s24, 1
        %p284 = scmp.lt.s32.totalorder %s23, 1
        %s285 = scalar_select %p284, %s23, 1
        %s286 = smul.addr %s283, 2
        %s287 = sadd.s32 %s285, %s286
        %s288 = smul.addr %s287, 8
        %s289 = scalar_lea.vmem %s4, %s288
        %v290 = vld [vmem:[%s269] sm:$0xff]
        %v291 = vrot.slane %v290, 4
        %v292 = vmax.f32 %v290, %v291
        %v293 = vrot.slane %v292, 2
        %v294 = vmax.f32 %v292, %v293
        %v295 = vrot.slane %v294, 1
        %v296 = vmax.f32 %v294, %v295
        %v297 = vsub.f32 %v290, %v296
        %v298 = vmul.f32 %v297, 1.442695
        %v299 = vpow.pop %v298
        %v300 = vrot.slane %v299, 4
        %v301 = vadd.f32 %v299, %v300
        %v302 = vrot.slane %v301, 2
        %v303 = vadd.f32 %v301, %v302
        %v304 = vrot.slane %v303, 1
        %v305 = vadd.f32 %v303, %v304
        %v306 = vrcp.pop %v305
        %v307 = vmul.f32 %v305, %v306
        %v308 = vsub.f32 1.0, %v307
        %v309 = vmul.f32 %v306, %v308
        %v310 = vadd.f32 %v306, %v309
        %vm311 = vweird.f32 %v305
        %vm312 = vweird.f32 %v306
        %vm313 = vmor %vm311, %vm312
        %v314 = vsel %vm313, %v306, %v310
        %v315 = vand.u32 2147483647, %v305
        %vm316 = vcmp.eq.f32.partialorder %v315, 8.507059e+37
        %v317 = vand.u32 %v305, 2147483648
        %v318 = vor.u32 1.1754944e-38, %v317
        %v319 = vsel %vm316, %v318, %v314
        %v320 = vmul.f32 %v299, %v319
        %321 = vst [vmem:[%s251] sm:$0xff] %v320
        %v322 = vlaneseq
        %v323 = vshrl.u32 %v322, 7
        %vm324 = vcmp.eq.f32.partialorder %v290, %v296
        %v325 = vsel %vm324, %v323, 8
        %v326 = vrot.slane %v325, 4
        %vm327 = vcmp.lt.s32.totalorder %v325, %v326
        %v328 = vsel %vm327, %v325, %v326
        %v329 = vrot.slane %v328, 2
        %vm330 = vcmp.lt.s32.totalorder %v328, %v329
        %v331 = vsel %vm330, %v328, %v329
        %v332 = vrot.slane %v331, 1
        %vm333 = vcmp.lt.s32.totalorder %v331, %v332
        %v334 = vsel %vm333, %v331, %v332
        %v335 = vcvt.s32.f32 %v334
        %vm336 = vcmp.gt.s32.totalorder %v334, 0
        %vm337 = vcmp.gt.f32.partialorder %v319, 0.3
        %vm338 = vmand %vm336, %vm337
        %v339 = vld [vmem:[%s277] sm:$0xf]
        %v340 = vld [vmem:[%s281] sm:$0xf]
        %v341 = vmul.f32 %v339, %v340
        %v342 = vld [vmem:[%s281 + $0x4] sm:$0xf]
        %v343 = vadd.f32 %v341, %v342
        %v344 = vsel %vm338, 1.0, 0.0
        %vm345 = vcmask 1043456
        %v346 = vsel %vm345, %v343, %v319
        %vm347 = vcmask 1044480
        %v348 = vsel %vm347, %v346, %v335
        %vm349 = vcmask 1045504
        %v350 = vsel %vm349, %v348, %v344
        %vm351 = vcmask 1046528
        %v352 = vsel %vm351, %v350, 0.0
        %353 = vst [vmem:[%s289] sm:$0xff] %v352
        %s354 = sand.u32 %s123, 1
        %s355 = scalar_lea.sflag [#allocation3], %s354
        %s356 = sand.u32 %s123, 1
        %s357 = smul.addr %s356, 8
        %s358 = scalar_lea.vmem [#allocation2], %s357
        %p359 = scmp.lt.s32.totalorder %s24, 1
        %s360 = scalar_select %p359, %s24, 1
        %p361 = scmp.lt.s32.totalorder %s23, 1
        %s362 = scalar_select %p361, %s23, 1
        %s363 = smul.addr %s360, 2
        %s364 = sadd.s32 %s362, %s363
        %s365 = smul.addr %s364, 8
        %s366 = scalar_lea.vmem %s4, %s365
        // Predicated region
        $region33: #{bbox_decoder_forward.1} parent=31 // pred_check
          %p367 = pneg %p133
        $region34: #{bbox_decoder_forward.1} parent=31 // pred_check_branch
          %369 = sbr.rel (%p367) target = $region36
        $region35: #{bbox_decoder_forward.1} parent=31 // pred_region
          %371 = vsyncadd %s355, 0
          %s372 = smul.addr %s24, 2
          %s373 = sadd.s32 %s23, %s372
          %s374 = smul.addr %s373, 8
          %s375 = scalar_lea.hbm %s3, %s374
          %s377 = sshll.u32 %s358, 4
          %s378 = int_to_ptr.vmem [resolvable:$true] %s377
          %s379 = sshll.u32 %s375, 4
          %s380 = int_to_ptr.hbm [resolvable:$true] %s379
          %382 = dma.vmem_to_hbm [thread:$0]  %s378, 128, %s380, %s355
        $region36: #{bbox_decoder_forward.1} parent=31 // pred_fallthru
          _
        // Predicated region
        $region37: #{bbox_decoder_forward.1} parent=31 // pred_check
          %p383 = pneg %p161
        $region38: #{bbox_decoder_forward.1} parent=31 // pred_check_branch
          %385 = sbr.rel (%p383) target = $region40
        $region39: #{bbox_decoder_forward.1} parent=31 // pred_region
          _
        $region40: #{bbox_decoder_forward.1} parent=31 // pred_fallthru
          _
      $region32: #{bbox_decoder_forward.1} parent=5 // pred_fallthru
        _
      %p386 = scmp.le.s32.totalorder 2, %s14
      // Predicated region
      $region41: #{bbox_decoder_forward.1} parent=5 // pred_check
        %p387 = pneg %p386
      $region42: #{bbox_decoder_forward.1} parent=5 // pred_check_branch
        %389 = sbr.rel (%p387) target = $region44
      $region43: #{bbox_decoder_forward.1} parent=5 // pred_region
        %s390 = ssub.s32 %s14, 2
        // Predicated region
        $region45: #{bbox_decoder_forward.1} parent=43 // pred_check
          %p391 = pneg %p139
        $region46: #{bbox_decoder_forward.1} parent=43 // pred_check_branch
          %393 = sbr.rel (%p391) target = $region48
        $region47: #{bbox_decoder_forward.1} parent=43 // pred_region
          %s394 = sand.u32 %s124, 1
          %s395 = scalar_lea.sflag [#allocation3], %s394
          %s396 = sand.u32 %s124, 1
          %s397 = smul.addr %s396, 8
          %s398 = scalar_lea.vmem [#allocation2], %s397
          %400 = dma.done %s395, 128
        $region48: #{bbox_decoder_forward.1} parent=43 // pred_fallthru
          _
        // Predicated region
        $region49: #{bbox_decoder_forward.1} parent=43 // pred_check
          %p401 = pneg %p167
        $region50: #{bbox_decoder_forward.1} parent=43 // pred_check_branch
          %403 = sbr.rel (%p401) target = $region52
        $region51: #{bbox_decoder_forward.1} parent=43 // pred_region
          %p404 = scmp.lt.s32.totalorder %s26, 1
          %s405 = scalar_select %p404, %s26, 1
          %p406 = scmp.lt.s32.totalorder %s25, 1
          %s407 = scalar_select %p406, %s25, 1
          %s408 = smul.addr %s405, 2
          %s409 = sadd.s32 %s407, %s408
          %s410 = smul.addr %s409, 8
          %s411 = scalar_lea.vmem %s4, %s410
        $region52: #{bbox_decoder_forward.1} parent=43 // pred_fallthru
          _
      $region44: #{bbox_decoder_forward.1} parent=5 // pred_fallthru
        _
    $region6: #{bbox_decoder_forward.1} parent=1 // loop_footer
      %s18 = sadd.s32 1, %s14
    $region7: #{bbox_decoder_forward.1} parent=1 // loop_footer_branch
      %13 = sbr.rel target = $region3
    $region8: #{bbox_decoder_forward.1} parent=1 // loop_exit
      _
    %412 = vsyncpa [#allocation3], 1
    %s413 = scalar_lea.sflag [#allocation3], 1
    %414 = vsyncpa %s413, 1

</llo_original>
